<compile_context>
chip_gen: v7x
topology: tpu7x:2x2x1
jax: 0.10.0
libtpu: 0.0.40
codegen_flags: <defaults>
</compile_context>

<pallas_src>
import functools
import math

import jax
import jax.numpy as jnp
from jax.experimental import pallas as pl
from jax.experimental.pallas import tpu as pltpu


def _round_up(a, b):
    return (a + b - 1) // b * b


def _pick_tile(total, target, quantum):
    """Largest multiple of `quantum` that divides `total` and is <= target."""
    target = max(min(target, total), quantum)
    if total <= target:
        return total
    best = quantum
    t = quantum
    while t <= target:
        if total % t == 0:
            best = t
        t += quantum
    return best


def _vmem_budget_bytes():
    """Conservative per-kernel VMEM budget that is safe on v5e/v6e/v7x."""
    try:
        phys = pltpu.get_tpu_info().vmem_capacity_bytes
    except Exception:
        phys = 64 << 20  # assume the smallest (v7x per-TC) if the query fails
    return int(min(phys // 2, 40 << 20))


# --------------------------------------------------------------------------
# Stage 1:  support = X @ W   (computed exactly once over row tiles)
# --------------------------------------------------------------------------
def _support_kernel(x_ref, w_ref, s_ref):
    s_ref[...] = jnp.dot(
        x_ref[...], w_ref[...], preferred_element_type=jnp.float32
    ).astype(s_ref.dtype)


# --------------------------------------------------------------------------
# Stage 2:  out = adj @ support + bias
#   grid = (row tiles, k tiles); k (adjacency-column contraction) is last and
#   "arbitrary"; accumulate into an f32 VMEM scratch.
# --------------------------------------------------------------------------
def _aggregate_resident_kernel(adj_ref, s_ref, b_ref, o_ref, acc_ref, *, tk):
    # `support` is fully resident in VMEM (constant block index -> DMA'd once);
    # slice the k-th row block out of it here.
    k = pl.program_id(1)

    @pl.when(k == 0)
    def _():
        acc_ref[...] = jnp.zeros_like(acc_ref)

    k_start = pl.multiple_of(k * tk, tk)
    s_blk = s_ref[pl.ds(k_start, tk), :]
    acc_ref[...] += jnp.dot(adj_ref[...], s_blk, preferred_element_type=jnp.float32)

    @pl.when(k == pl.num_programs(1) - 1)
    def _():
        # bias add in f32 on the VPU, lane-dense store (F_out padded to 128)
        o_ref[...] = (acc_ref[...] + b_ref[...]).astype(o_ref.dtype)


def _aggregate_stream_kernel(adj_ref, s_ref, b_ref, o_ref, acc_ref):
    # Fallback for large support: (tk, F_out_p) support tiles streamed per k.
    k = pl.program_id(1)

    @pl.when(k == 0)
    def _():
        acc_ref[...] = jnp.zeros_like(acc_ref)

    acc_ref[...] += jnp.dot(
        adj_ref[...], s_ref[...], preferred_element_type=jnp.float32
    )

    @pl.when(k == pl.num_programs(1) - 1)
    def _():
        o_ref[...] = (acc_ref[...] + b_ref[...]).astype(o_ref.dtype)


def graph_convolution(
    x,
    adj,
    weight,
    bias=None,
    *,
    tm=512,                      # target adjacency row tile (auto-adjusted)
    tk=None,                     # target contraction tile (auto: 1024 f32 / 2048 bf16)
    compute_dtype=jnp.float32,   # jnp.bfloat16: half the adj DMA, f32 accumulation
    support_resident=None,       # None = auto; False forces the streaming path
):
    """Pallas GCN forward: adj @ (x @ weight) + bias."""
    n, f_in = x.shape
    f_out = weight.shape[1]
    assert adj.shape == (n, n)

    compute_dtype = jnp.dtype(compute_dtype)
    itemsize = compute_dtype.itemsize

    # Lane-dense output: pad F_out to a multiple of 128 (unmasked stores, full
    # MXU result columns); slice back at the end.
    f_out_p = _round_up(f_out, 128)
    # Pad N at 128 granularity only (never to tk).
    n_p = _round_up(n, 128)

    x_c = x.astype(compute_dtype)
    adj_c = adj.astype(compute_dtype)
    if n_p != n:
        x_c = jnp.zeros((n_p, f_in), compute_dtype).at[:n, :].set(x_c)
        adj_c = jnp.zeros((n_p, n_p), compute_dtype).at[:n, :n].set(adj_c)
    w_c = (
        jnp.zeros((f_in, f_out_p), compute_dtype)
        .at[:, :f_out]
        .set(weight.astype(compute_dtype))
    )
    b_c = jnp.zeros((1, f_out_p), jnp.float32)
    if bias is not None:
        b_c = b_c.at[0, :f_out].set(bias.astype(jnp.float32))

    vmem_cap = _vmem_budget_bytes()

    # ---------------- stage 1: support = X @ W ----------------
    # Per-step compute is tiny -> use a large row tile (otherwise the kernel is
    # pure per-step overhead), but bound it so the (tm1, f_in) x-tile plus the
    # full weight fit the VMEM budget.
    tm1 = _pick_tile(n_p, 1024, 128)

    def s1_bytes(t):
        return (
            2 * t * f_in * itemsize          # x tile (double-buffered)
            + 2 * f_in * f_out_p * itemsize  # weight (constant block)
            + 2 * t * f_out_p * itemsize     # support output tile
        )

    while tm1 > 128 and s1_bytes(tm1) > vmem_cap:
        tm1 = _pick_tile(n_p, tm1 // 2, 128)
    # TODO(synk): K-tile f_in with an accumulator (same pattern as stage 2) if
    # f_in * f_out_p alone exceeds the VMEM budget (extremely wide features).

    support = pl.pallas_call(
        _support_kernel,
        out_shape=jax.ShapeDtypeStruct((n_p, f_out_p), compute_dtype),
        grid_spec=pltpu.PrefetchScalarGridSpec(
            num_scalar_prefetch=0,
            grid=(n_p // tm1,),
            in_specs=[
                pl.BlockSpec((tm1, f_in), lambda i: (i, 0)),
                pl.BlockSpec((f_in, f_out_p), lambda i: (0, 0)),
            ],
            out_specs=pl.BlockSpec((tm1, f_out_p), lambda i: (i, 0)),
        ),
        compiler_params=pltpu.CompilerParams(
            dimension_semantics=("parallel",),
            vmem_limit_bytes=int(min(max(s1_bytes(tm1) * 5 // 4, 4 << 20), vmem_cap)),
        ),
    )(x_c, w_c)

    # ---------------- stage 2: out = adj @ support + bias ----------------
    # Row tile: keep >= 2 row tiles when possible so v7x's two TensorCores both
    # get work on the "parallel" axis.
    tm_target = min(tm, n_p)
    if n_p >= 256:
        tm_target = min(tm_target, n_p // 2)
    tm2 = _pick_tile(n_p, tm_target, 128)

    # Contraction tile: large enough that the adjacency-tile DMA (>= ~1-2 MiB)
    # amortizes the per-grid-step overhead.
    if tk is None:
        tk = 2048 if itemsize <= 2 else 1024
    tk2 = _pick_tile(n_p, tk, 128)

    sup_resident_bytes = 2 * n_p * f_out_p * itemsize  # assume double-buffered

    def s2_bytes(resident):
        b = (
            2 * tm2 * tk2 * itemsize   # adjacency tile (double-buffered)
            + 2 * tm2 * f_out_p * 4    # output tile
            + tm2 * f_out_p * 4        # f32 accumulator scratch
            + 2 * f_out_p * 4          # bias
        )
        b += sup_resident_bytes if resident else 2 * tk2 * f_out_p * itemsize
        return b

    if support_resident is None:
        support_resident = (
            s2_bytes(True) <= vmem_cap and sup_resident_bytes <= (8 << 20)
        )

    if support_resident:
        kernel = functools.partial(_aggregate_resident_kernel, tk=tk2)
        support_spec = pl.BlockSpec((n_p, f_out_p), lambda i, k: (0, 0))
    else:
        kernel = _aggregate_stream_kernel
        support_spec = pl.BlockSpec((tk2, f_out_p), lambda i, k: (k, 0))

    out = pl.pallas_call(
        kernel,
        out_shape=jax.ShapeDtypeStruct((n_p, f_out_p), jnp.float32),
        grid_spec=pltpu.PrefetchScalarGridSpec(
            num_scalar_prefetch=0,
            grid=(n_p // tm2, n_p // tk2),
            in_specs=[
                pl.BlockSpec((tm2, tk2), lambda i, k: (i, k)),   # adjacency tile
                support_spec,                                    # support
                pl.BlockSpec((1, f_out_p), lambda i, k: (0, 0)),  # bias
            ],
            out_specs=pl.BlockSpec((tm2, f_out_p), lambda i, k: (i, 0)),
            scratch_shapes=[pltpu.VMEM((tm2, f_out_p), jnp.float32)],
        ),
        compiler_params=pltpu.CompilerParams(
            dimension_semantics=("parallel", "arbitrary"),
            vmem_limit_bytes=int(
                min(max(s2_bytes(support_resident) * 5 // 4, 8 << 20), vmem_cap)
            ),
        ),
    )(adj_c, support, b_c)

    return out[:n, :f_out]


def init_params(key, in_features, out_features):
    """Deterministic init matching GraphConvolution.reset_parameters."""
    stdv = 1.0 / math.sqrt(out_features)
    kw, kb = jax.random.split(key)
    weight = jax.random.uniform(
        kw, (in_features, out_features), jnp.float32, minval=-stdv, maxval=stdv
    )
    bias = jax.random.uniform(
        kb, (out_features,), jnp.float32, minval=-stdv, maxval=stdv
    )
    return weight, bias


def _make_adj(k, n):
    """Dense symmetric row-normalized adjacency."""
    a_raw = (jax.random.uniform(k, (n, n)) < 0.1).astype(jnp.float32)
    a_sym = jnp.maximum(a_raw, a_raw.T) + jnp.eye(n, dtype=jnp.float32)
    deg = jnp.sum(a_sym, axis=1, keepdims=True)
    return a_sym / deg


if __name__ == "__main__":
    key = jax.random.PRNGKey(0)
    k_x, k_adj, k_p, k_x2, k_adj2, k_p2 = jax.random.split(key, 6)

    # ---- small, tile-aligned problem ----
    N, F_IN, F_OUT = 128, 64, 32
    x = jax.random.normal(k_x, (N, F_IN), jnp.float32)
    adj = _make_adj(k_adj, N)
    weight, bias = init_params(k_p, F_IN, F_OUT)

    out = jax.block_until_ready(graph_convolution(x, adj, weight, bias))
    ref = adj @ (x @ weight) + bias[None, :]
    assert out.shape == (N, F_OUT)
    assert jnp.allclose(out, ref, atol=2e-3, rtol=2e-3)

    # bf16 operands / f32 MXU accumulation (looser tolerance)
    out_bf16 = jax.block_until_ready(
        graph_convolution(x, adj, weight, bias, compute_dtype=jnp.bfloat16)
    )
    assert jnp.allclose(out_bf16, ref, atol=5e-2, rtol=5e-2)

    # no-bias path
    out_nb = jax.block_until_ready(graph_convolution(x, adj, weight, None))
    assert jnp.allclose(out_nb, adj @ (x @ weight), atol=2e-3, rtol=2e-3)

    # ---- larger, non-128-aligned problem: padding + multi-step accumulation ----
    N2, F_IN2, F_OUT2 = 300, 48, 72
    x2 = jax.random.normal(k_x2, (N2, F_IN2), jnp.float32)
    adj2 = _make_adj(k_adj2, N2)
    w2, b2 = init_params(k_p2, F_IN2, F_OUT2)
    ref2 = adj2 @ (x2 @ w2) + b2[None, :]

    out2 = jax.block_until_ready(graph_convolution(x2, adj2, w2, b2, tm=128, tk=256))
    assert out2.shape == (N2, F_OUT2)
    assert jnp.allclose(out2, ref2, atol=2e-3, rtol=2e-3)

    # forced streaming-support path (large-graph fallback), same numerics
    out3 = jax.block_until_ready(
        graph_convolution(x2, adj2, w2, b2, tm=128, tk=128, support_resident=False)
    )
    assert jnp.allclose(out3, ref2, atol=2e-3, rtol=2e-3)

    print("KERNEL_OK")
</pallas_src>

<mosaic_0001>
module attributes {stable_mosaic.version = 11 : i64} {
  func.func @_support_kernel(%arg0: i32, %arg1: memref<128x64xf32, #tpu.memory_space<vmem>>, %arg2: memref<64x128xf32, #tpu.memory_space<vmem>>, %arg3: memref<128x128xf32, #tpu.memory_space<vmem>>) attributes {dimension_semantics = [#tpu.dimension_semantics<parallel>], iteration_bounds = array<i64: 1>, scalar_prefetch = 0 : i64, scratch_operands = 0 : i64, tpu.core_type = #tpu.core_type<tc>, window_params = [{transform_indices = @transform_0, window_bounds = array<i64: 128, 64>}, {pipeline_mode = #tpu.pipeline_mode<synchronous>, transform_indices = @transform_1, window_bounds = array<i64: 64, 128>}, {transform_indices = @transform_2, window_bounds = array<i64: 128, 128>}]} {
    %c0 = arith.constant 0 : index
    %c0_0 = arith.constant 0 : index
    %0 = vector.load %arg1[%c0, %c0_0] : memref<128x64xf32, #tpu.memory_space<vmem>>, vector<128x64xf32>
    %c0_1 = arith.constant 0 : index
    %c0_2 = arith.constant 0 : index
    %1 = vector.load %arg2[%c0_1, %c0_2] : memref<64x128xf32, #tpu.memory_space<vmem>>, vector<64x128xf32>
    %cst = arith.constant dense<0.000000e+00> : vector<128x128xf32>
    %2 = tpu.matmul %0, %1, %cst {dimension_numbers = #tpu.dot_dimension_numbers<[1], [0], [0], [1], [0, 0, 1, 1], [], []>} : vector<128x64xf32>, vector<64x128xf32>, vector<128x128xf32> -> vector<128x128xf32>
    %c0_3 = arith.constant 0 : index
    %c0_4 = arith.constant 0 : index
    %3 = vector.load %arg3[%c0_3, %c0_4] : memref<128x128xf32, #tpu.memory_space<vmem>>, vector<128x128xf32>
    tpu.vector_store %arg3[%c0_3, %c0_4], %2 {strides = array<i32>} : memref<128x128xf32, #tpu.memory_space<vmem>>, vector<128x128xf32>,
    return
  }
  func.func @transform_0(%arg0: i32) -> (i32, i32) {
    %c0_i32 = arith.constant 0 : i32
    %c0_i32_0 = arith.constant 0 : i32
    return %arg0, %c0_i32 : i32, i32
  }
  func.func @transform_1(%arg0: i32) -> (i32, i32) {
    %c0_i32 = arith.constant 0 : i32
    %c0_i32_0 = arith.constant 0 : i32
    %c0_i32_1 = arith.constant 0 : i32
    return %c0_i32, %c0_i32_0 : i32, i32
  }
  func.func @transform_2(%arg0: i32) -> (i32, i32) {
    %c0_i32 = arith.constant 0 : i32
    %c0_i32_0 = arith.constant 0 : i32
    return %arg0, %c0_i32 : i32, i32
  }
}

</mosaic_0001>

<llo_original>
// kernel: tpu_custom_call.1
$region0: #{tpu_custom_call.1}
  #allocation0 [shape = 'u32[]', space=smem, size = 0x4, offset = 0x4, fixed_abs, tag = 'smem constant byte address 0x4 - core index']
  #allocation1 [shape = 'u32[144,128]{1,0:T(1,128)}', space=vmem, size = 0x12000, scoped, tag = 'internal scratch']
  %s0 = inlined_call_operand.vmem [shape: f32[128,64], index: 0, kind: input, shape index: {}]
  %s1 = inlined_call_operand.vmem [shape: f32[64,128], index: 1, kind: input, shape index: {}]
  %s2 = inlined_call_operand.hbm [shape: f32[128,128], index: 2, kind: output, shape index: {}]
  %s3 = sld [smem:[#allocation0]]
  $region18: #{tpu_custom_call.1} parent=0
    _
  %s5 = ssub.s32 1, %s3
  %s6 = scalar_select 0, %s5, %s3
  $region1: #{tpu_custom_call.1} parent=0
    #allocation2 [shape = 'u8[65536]{0}', space=vmem, size = 0x10000, scoped, tag = 'output window, operand 0, single buffered']
    #allocation3 [shape = 's32[1]{0}', space=sflag, size = 0x4, scoped, tag = 'scoped memory for tpu_custom_call.1']
    %7 = vsyncpa [#allocation3], 0
    // Predicated region
    $region2: #{tpu_custom_call.1} parent=1 // pred_check
      _
    $region3: #{tpu_custom_call.1} parent=1 // pred_check_branch
      %9 = sbr.rel (0) target = $region5
    $region4: #{tpu_custom_call.1} parent=1 // pred_region
      _
    $region5: #{tpu_custom_call.1} parent=1 // pred_fallthru
      _
    // Predicated region
    $region6: #{tpu_custom_call.1} parent=1 // pred_check
      _
    $region7: #{tpu_custom_call.1} parent=1 // pred_check_branch
      %11 = sbr.rel (0) target = $region9
    $region8: #{tpu_custom_call.1} parent=1 // pred_region
      _
    $region9: #{tpu_custom_call.1} parent=1 // pred_fallthru
      _
    %v12 = vld [vmem:[%s0] sm:$0xff]
    %v13 = vld [vmem:[%s0 + $0x8] sm:$0xff]
    %v14 = vld [vmem:[%s0 + $0x10] sm:$0xff]
    %v15 = vld [vmem:[%s0 + $0x18] sm:$0xff]
    %v16 = vld [vmem:[%s0 + $0x20] sm:$0xff]
    %v17 = vld [vmem:[%s0 + $0x28] sm:$0xff]
    %v18 = vld [vmem:[%s0 + $0x30] sm:$0xff]
    %v19 = vld [vmem:[%s0 + $0x38] sm:$0xff]
    %v20 = vld [vmem:[%s0 + $0x40] sm:$0xff]
    %v21 = vld [vmem:[%s0 + $0x48] sm:$0xff]
    %v22 = vld [vmem:[%s0 + $0x50] sm:$0xff]
    %v23 = vld [vmem:[%s0 + $0x58] sm:$0xff]
    %v24 = vld [vmem:[%s0 + $0x60] sm:$0xff]
    %v25 = vld [vmem:[%s0 + $0x68] sm:$0xff]
    %v26 = vld [vmem:[%s0 + $0x70] sm:$0xff]
    %v27 = vld [vmem:[%s0 + $0x78] sm:$0xff]
    %v28 = vld [vmem:[%s1] sm:$0xff]
    %v29 = vld [vmem:[%s1 + $0x8] sm:$0xff]
    %v30 = vld [vmem:[%s1 + $0x10] sm:$0xff]
    %v31 = vld [vmem:[%s1 + $0x18] sm:$0xff]
    %v32 = vld [vmem:[%s1 + $0x20] sm:$0xff]
    %v33 = vld [vmem:[%s1 + $0x28] sm:$0xff]
    %v34 = vld [vmem:[%s1 + $0x30] sm:$0xff]
    %v35 = vld [vmem:[%s1 + $0x38] sm:$0xff]
    %vm36 = vcmask 523264
    %v38 = vsel %vm36, %v12, 0
    %v41 = vsel %vm36, %v13, 0
    %v44 = vsel %vm36, %v14, 0
    %v47 = vsel %vm36, %v15, 0
    %v50 = vsel %vm36, %v16, 0
    %v53 = vsel %vm36, %v17, 0
    %v56 = vsel %vm36, %v18, 0
    %v59 = vsel %vm36, %v19, 0
    %v62 = vsel %vm36, %v20, 0
    %v65 = vsel %vm36, %v21, 0
    %v68 = vsel %vm36, %v22, 0
    %v71 = vsel %vm36, %v23, 0
    %v74 = vsel %vm36, %v24, 0
    %v77 = vsel %vm36, %v25, 0
    %v80 = vsel %vm36, %v26, 0
    %v83 = vsel %vm36, %v27, 0
    %85 = vmatprep.subr.mxu0 0.0
    %86 = vmatpush1.msra.mxu0 %v28
    %87 = vmatprep.subr.mxu0 0.0
    %88 = vmatpush1.msra.mxu0 %v29
    %89 = vmatprep.subr.mxu0 0.0
    %90 = vmatpush1.msra.mxu0 %v30
    %91 = vmatprep.subr.mxu0 0.0
    %92 = vmatpush1.msra.mxu0 %v31
    %93 = vmatprep.subr.mxu0 0.0
    %94 = vmatpush1.msra.mxu0 %v32
    %95 = vmatprep.subr.mxu0 0.0
    %96 = vmatpush1.msra.mxu0 %v33
    %97 = vmatprep.subr.mxu0 0.0
    %98 = vmatpush1.msra.mxu0 %v34
    %99 = vmatprep.subr.mxu0 0.0
    %100 = vmatpush1.msra.mxu0 %v35
    %101 = vmatprep.subr.mxu0 0.0
    %102 = vmatpush1.msra.mxu0 0.0
    %103 = vmatprep.subr.mxu0 0.0
    %104 = vmatpush1.msra.mxu0 0.0
    %105 = vmatprep.subr.mxu0 0.0
    %106 = vmatpush1.msra.mxu0 0.0
    %107 = vmatprep.subr.mxu0 0.0
    %108 = vmatpush1.msra.mxu0 0.0
    %109 = vmatprep.subr.mxu0 0.0
    %110 = vmatpush1.msra.mxu0 0.0
    %111 = vmatprep.subr.mxu0 0.0
    %112 = vmatpush1.msra.mxu0 0.0
    %113 = vmatprep.subr.mxu0 0.0
    %114 = vmatpush1.msra.mxu0 0.0
    %115 = vmatprep.subr.mxu0 0.0
    %116 = vmatpush1.msra.mxu0 0.0
    %117 = vmatprep.subr.mxu0 0.0
    %118 = vmatpush1.msra.mxu0 0.0
    %119 = vmatprep.subr.mxu0 0.0
    %120 = vmatpush1.msra.mxu0 0.0
    %121 = vmatprep.subr.mxu0 0.0
    %122 = vmatpush1.msra.mxu0 0.0
    %123 = vmatprep.subr.mxu0 0.0
    %124 = vmatpush1.msra.mxu0 0.0
    %125 = vmatprep.subr.mxu0 0.0
    %126 = vmatpush1.msra.mxu0 0.0
    %127 = vmatprep.subr.mxu0 0.0
    %128 = vmatpush1.msra.mxu0 0.0
    %129 = vmatprep.subr.mxu0 0.0
    %130 = vmatpush1.msra.mxu0 0.0
    %131 = vmatprep.subr.mxu0 0.0
    %132 = vmatpush1.msra.mxu0 0.0
    %133 = vmatprep.subr.mxu0 0.0
    %134 = vmatpush1.msra.mxu0 0.0
    %135 = vmatprep.subr.mxu0 0.0
    %136 = vmatpush1.msra.mxu0 0.0
    %137 = vmatprep.subr.mxu0 0.0
    %138 = vmatpush1.msra.mxu0 0.0
    %139 = vmatprep.subr.mxu0 0.0
    %140 = vmatpush1.msra.mxu0 0.0
    %141 = vmatprep.subr.mxu0 0.0
    %142 = vmatpush1.msra.mxu0 0.0
    %143 = vmatprep.subr.mxu0 0.0
    %144 = vmatpush1.msra.mxu0 0.0
    %145 = vmatprep.subr.mxu0 0.0
    %146 = vmatpush1.msra.mxu0 0.0
    %147 = vmatprep.subr.mxu0 0.0
    %148 = vmatpush1.msra.mxu0 0.0
    %149 = vmatprep.mubr.f32.mxu0 0.0
    %150 = vmatmul.mubr.f32.gmra.mrb[0].mxu0 %v38
    %v151 = vpop.f32.mrb[0].mxu0
    %v152 = vadd.f32 0.0, %v151
    %v153 = vpop.f32.mrb[0].mxu0
    %154 = vmatprep.mubr.f32.mxu0 0.0
    %155 = vmatmul.mubr.f32.gmra.mrb[0].mxu0 %v41
    %v156 = vpop.f32.mrb[0].mxu0
    %v157 = vadd.f32 0.0, %v156
    %v158 = vpop.f32.mrb[0].mxu0
    %159 = vmatprep.mubr.f32.mxu0 0.0
    %160 = vmatmul.mubr.f32.gmra.mrb[0].mxu0 %v44
    %v161 = vpop.f32.mrb[0].mxu0
    %v162 = vadd.f32 0.0, %v161
    %v163 = vpop.f32.mrb[0].mxu0
    %164 = vmatprep.mubr.f32.mxu0 0.0
    %165 = vmatmul.mubr.f32.gmra.mrb[0].mxu0 %v47
    %v166 = vpop.f32.mrb[0].mxu0
    %v167 = vadd.f32 0.0, %v166
    %v168 = vpop.f32.mrb[0].mxu0
    %169 = vmatprep.mubr.f32.mxu0 0.0
    %170 = vmatmul.mubr.f32.gmra.mrb[0].mxu0 %v50
    %v171 = vpop.f32.mrb[0].mxu0
    %v172 = vadd.f32 0.0, %v171
    %v173 = vpop.f32.mrb[0].mxu0
    %174 = vmatprep.mubr.f32.mxu0 0.0
    %175 = vmatmul.mubr.f32.gmra.mrb[0].mxu0 %v53
    %v176 = vpop.f32.mrb[0].mxu0
    %v177 = vadd.f32 0.0, %v176
    %v178 = vpop.f32.mrb[0].mxu0
    %179 = vmatprep.mubr.f32.mxu0 0.0
    %180 = vmatmul.mubr.f32.gmra.mrb[0].mxu0 %v56
    %v181 = vpop.f32.mrb[0].mxu0
    %v182 = vadd.f32 0.0, %v181
    %v183 = vpop.f32.mrb[0].mxu0
    %184 = vmatprep.mubr.f32.mxu0 0.0
    %185 = vmatmul.mubr.f32.gmra.mrb[0].mxu0 %v59
    %v186 = vpop.f32.mrb[0].mxu0
    %v187 = vadd.f32 0.0, %v186
    %v188 = vpop.f32.mrb[0].mxu0
    %189 = vmatprep.mubr.f32.mxu0 0.0
    %190 = vmatmul.mubr.f32.gmra.mrb[0].mxu0 %v62
    %v191 = vpop.f32.mrb[0].mxu0
    %v192 = vadd.f32 0.0, %v191
    %v193 = vpop.f32.mrb[0].mxu0
    %194 = vmatprep.mubr.f32.mxu0 0.0
    %195 = vmatmul.mubr.f32.gmra.mrb[0].mxu0 %v65
    %v196 = vpop.f32.mrb[0].mxu0
    %v197 = vadd.f32 0.0, %v196
    %v198 = vpop.f32.mrb[0].mxu0
    %199 = vmatprep.mubr.f32.mxu0 0.0
    %200 = vmatmul.mubr.f32.gmra.mrb[0].mxu0 %v68
    %v201 = vpop.f32.mrb[0].mxu0
    %v202 = vadd.f32 0.0, %v201
    %v203 = vpop.f32.mrb[0].mxu0
    %204 = vmatprep.mubr.f32.mxu0 0.0
    %205 = vmatmul.mubr.f32.gmra.mrb[0].mxu0 %v71
    %v206 = vpop.f32.mrb[0].mxu0
    %v207 = vadd.f32 0.0, %v206
    %v208 = vpop.f32.mrb[0].mxu0
    %209 = vmatprep.mubr.f32.mxu0 0.0
    %210 = vmatmul.mubr.f32.gmra.mrb[0].mxu0 %v74
    %v211 = vpop.f32.mrb[0].mxu0
    %v212 = vadd.f32 0.0, %v211
    %v213 = vpop.f32.mrb[0].mxu0
    %214 = vmatprep.mubr.f32.mxu0 0.0
    %215 = vmatmul.mubr.f32.gmra.mrb[0].mxu0 %v77
    %v216 = vpop.f32.mrb[0].mxu0
    %v217 = vadd.f32 0.0, %v216
    %v218 = vpop.f32.mrb[0].mxu0
    %219 = vmatprep.mubr.f32.mxu0 0.0
    %220 = vmatmul.mubr.f32.gmra.mrb[0].mxu0 %v80
    %v221 = vpop.f32.mrb[0].mxu0
    %v222 = vadd.f32 0.0, %v221
    %v223 = vpop.f32.mrb[0].mxu0
    %224 = vmatprep.mubr.f32.mxu0 0.0
    %225 = vmatmul.mubr.f32.gmra.mrb[0].mxu0 %v83
    %v226 = vpop.f32.mrb[0].mxu0
    %v227 = vadd.f32 0.0, %v226
    %v228 = vpop.f32.mrb[0].mxu0
    %229 = vdwg.mxu0
    %230 = vst [vmem:[#allocation2] sm:$0xff] %v152
    %231 = vst [vmem:[#allocation2 + $0x8] sm:$0xff] %v157
    %232 = vst [vmem:[#allocation2 + $0x10] sm:$0xff] %v162
    %233 = vst [vmem:[#allocation2 + $0x18] sm:$0xff] %v167
    %234 = vst [vmem:[#allocation2 + $0x20] sm:$0xff] %v172
    %235 = vst [vmem:[#allocation2 + $0x28] sm:$0xff] %v177
    %236 = vst [vmem:[#allocation2 + $0x30] sm:$0xff] %v182
    %237 = vst [vmem:[#allocation2 + $0x38] sm:$0xff] %v187
    %238 = vst [vmem:[#allocation2 + $0x40] sm:$0xff] %v192
    %239 = vst [vmem:[#allocation2 + $0x48] sm:$0xff] %v197
    %240 = vst [vmem:[#allocation2 + $0x50] sm:$0xff] %v202
    %241 = vst [vmem:[#allocation2 + $0x58] sm:$0xff] %v207
    %242 = vst [vmem:[#allocation2 + $0x60] sm:$0xff] %v212
    %243 = vst [vmem:[#allocation2 + $0x68] sm:$0xff] %v217
    %244 = vst [vmem:[#allocation2 + $0x70] sm:$0xff] %v222
    %245 = vst [vmem:[#allocation2 + $0x78] sm:$0xff] %v227
    // Predicated region
    $region10: #{tpu_custom_call.1} parent=1 // pred_check
      _
    $region11: #{tpu_custom_call.1} parent=1 // pred_check_branch
      %247 = sbr.rel (0) target = $region13
    $region12: #{tpu_custom_call.1} parent=1 // pred_region
      %s249 = ssub.s32 2048, 2048
      %250 = vsyncadd [#allocation3], %s249
      %s251 = sshll.u32 [#allocation2], 4
      %s252 = int_to_ptr.vmem [resolvable:$true] %s251
      %257 = dma.vmem_to_hbm [thread:$0]  %s252, 2048, %s2, [#allocation3], 128, 128, 8
    $region13: #{tpu_custom_call.1} parent=1 // pred_fallthru
      _
    // Predicated region
    $region14: #{tpu_custom_call.1} parent=1 // pred_check
      _
    $region15: #{tpu_custom_call.1} parent=1 // pred_check_branch
      %259 = sbr.rel (0) target = $region17
    $region16: #{tpu_custom_call.1} parent=1 // pred_region
      %260 = dma.done [#allocation3], 2048
    $region17: #{tpu_custom_call.1} parent=1 // pred_fallthru
      _
    %261 = vsyncpa [#allocation3], 1

</llo_original>
